<compile_context>
chip_gen: v5e
topology: v5e:2x2
jax: 0.10.0
libtpu: 0.0.40
codegen_flags: <defaults>
</compile_context>

<pallas_src>
import functools

import jax
import jax.numpy as jnp
from jax.experimental import pallas as pl
from jax.experimental.pallas import tpu as pltpu


def _round_up(v, m):
    return ((v + m - 1) // m) * m


# ---------------- kernel 1: h = x @ W (+ ones column), per-node logits ----------------

def _proj_kernel(x_ref, w_ref, a_src_ref, a_dst_ref, h_ref, f1_ref, f2_ref):
    # f32 matmul for accurate logits; the extra x column / W row generate the
    # constant 1.0 in h[:, Fout] (a padded column) for the pass-2 rowsum.
    h = jnp.dot(x_ref[...], w_ref[...], preferred_element_type=jnp.float32)
    # attention-logit halves on VPU (mul) + XLU (lane reduce); a_src/a_dst are
    # zero in the padded columns so the ones column does not leak into them.
    f1_ref[...] = jnp.sum(h * a_src_ref[...], axis=-1, keepdims=True)
    f2_ref[...] = jnp.sum(h * a_dst_ref[...], axis=-1, keepdims=True)
    # bf16 h: halves pass-2 streaming traffic and feeds the MXU's native path.
    h_ref[...] = h.astype(h_ref.dtype)


# ---------------- kernel 2: masked attention aggregation (tiled) ----------------

def _agg_kernel(f1_ref, f2_ref, hk_ref, adj_ref, out_ref, acc_ref, *, alpha, fout):
    k = pl.program_id(1)

    @pl.when(k == 0)
    def _():
        acc_ref[...] = jnp.zeros_like(acc_ref)

    # edge logits for this (row-tile, key-tile) block: e[i, j] = f1[i] + f2[j]
    # (f2 arrives pre-transposed as a [1, TK] row vector).
    e = f1_ref[...] + f2_ref[...]                          # [TM, TK] f32
    lrelu = jnp.where(e > 0, e, alpha * e)
    s = jnp.where(adj_ref[...] != 0, jnp.exp(-lrelu), 0.0)  # int8 edge mask
    # bf16 x bf16 MXU matmul, f32 accumulation.  h's padded column `fout` is a
    # constant 1.0, so acc[:, fout] accumulates the rowsum for free.
    acc_ref[...] += jnp.dot(s.astype(jnp.bfloat16), hk_ref[...],
                            preferred_element_type=jnp.float32)

    @pl.when(k == pl.num_programs(1) - 1)
    def _():
        # TODO(synk): torch applies nn.Dropout to edge_e before the second
        # spmm; this kernel implements eval-mode (identity) dropout.
        acc = acc_ref[...]
        col = jax.lax.broadcasted_iota(jnp.int32, acc.shape, 1)
        rowsum = jnp.sum(jnp.where(col == fout, acc, 0.0), axis=-1, keepdims=True)
        # Guard isolated / padded rows (rowsum == 0) -> 0 instead of NaN.
        inv = pl.reciprocal(jnp.maximum(rowsum, 1e-30), approx=False)
        hp = acc * inv
        # ELU (torch uses expm1; exp(x)-1 differs by ~1e-7 near 0).
        out_ref[...] = jnp.where(hp > 0, hp, jnp.exp(hp) - 1.0).astype(out_ref.dtype)


# ---------------- wrapper ----------------

def sp_graph_attention_layer(x, adj, W, a, *, alpha=0.2):
    """x: [N, Fin], adj: [N, N] (any numeric), W: [Fin, Fout], a: [1, 2*Fout]."""
    N, Fin = x.shape
    Fout = W.shape[1]
    f32 = jnp.float32

    # lane-dense feature dim (>=128, multiple of 128) with at least one spare
    # column (index Fout) reserved for the rowsum "ones" column.
    Fp = _round_up(max(Fout + 1, 128), 128)
    Fin_p = _round_up(Fin + 1, 8)          # +1 ones-generator column in x

    Np0 = _round_up(N, 128)
    # Large tiles amortize h re-streaming ((Np/TM) passes over h) and per-step
    # overhead; keep >= 2 row tiles when possible so v7x megacore gets work on
    # both TensorCores.
    if Np0 >= 1024:
        TM = 512
    elif Np0 >= 512:
        TM = 256
    else:
        TM = 128
    if Np0 >= 512:
        TK = 512
    elif Np0 >= 256:
        TK = 256
    else:
        TK = 128
    Np = _round_up(Np0, max(TM, TK))

    x_p = jnp.zeros((Np, Fin_p), f32).at[:N, :Fin].set(x.astype(f32))
    x_p = x_p.at[:, Fin].set(1.0)                                # ones generator
    W_p = jnp.zeros((Fin_p, Fp), f32).at[:Fin, :Fout].set(W.astype(f32))
    W_p = W_p.at[Fin, Fout].set(1.0)                             # -> h[:, Fout] = 1
    a_src = jnp.zeros((1, Fp), f32).at[:, :Fout].set(a[:, :Fout].astype(f32))
    a_dst = jnp.zeros((1, Fp), f32).at[:, :Fout].set(a[:, Fout:].astype(f32))
    # adjacency streamed as int8 edge mask (4x less HBM traffic than f32)
    adj_i8 = jnp.zeros((Np, Np), jnp.int8).at[:N, :N].set((adj != 0).astype(jnp.int8))

    # Per-step footprint (TM=TK=512, Fp=128): hk 2x128KiB + adj 2x256KiB +
    # out 2x256KiB + acc 256KiB + small f1/f2 ~ 1.5 MiB << 32 MiB; safe on
    # v5e/v6e (128 MiB VMEM) and v7x (64 MiB VMEM).
    vmem_limit = 32 * 1024 * 1024

    # ---- pass 1: projection + per-node logits ----
    h, f1, f2 = pl.pallas_call(
        _proj_kernel,
        out_shape=(
            jax.ShapeDtypeStruct((Np, Fp), jnp.bfloat16),
            jax.ShapeDtypeStruct((Np, 1), f32),
            jax.ShapeDtypeStruct((Np, 1), f32),
        ),
        grid=(Np // TM,),
        in_specs=[
            pl.BlockSpec((TM, Fin_p), lambda i: (i, 0)),   # x row tile
            pl.BlockSpec((Fin_p, Fp), lambda i: (0, 0)),   # W (resident)
            pl.BlockSpec((1, Fp), lambda i: (0, 0)),       # a_src
            pl.BlockSpec((1, Fp), lambda i: (0, 0)),       # a_dst
        ],
        out_specs=(
            pl.BlockSpec((TM, Fp), lambda i: (i, 0)),      # h (bf16)
            pl.BlockSpec((TM, 1), lambda i: (i, 0)),       # f1
            pl.BlockSpec((TM, 1), lambda i: (i, 0)),       # f2
        ),
        compiler_params=pltpu.CompilerParams(
            dimension_semantics=("parallel",),
            vmem_limit_bytes=vmem_limit,
        ),
    )(x_p, W_p, a_src, a_dst)

    # hoist f2 into a [1, N] row vector once (tiny relayout, outside hot loop)
    f2_row = f2.reshape(1, Np)

    # ---- pass 2: tiled masked aggregation ----
    out = pl.pallas_call(
        functools.partial(_agg_kernel, alpha=alpha, fout=Fout),
        out_shape=jax.ShapeDtypeStruct((Np, Fp), f32),
        grid=(Np // TM, Np // TK),
        in_specs=[
            pl.BlockSpec((TM, 1), lambda i, k: (i, 0)),    # f1 (row logits)
            pl.BlockSpec((1, TK), lambda i, k: (0, k)),    # f2 (key logits, row vec)
            pl.BlockSpec((TK, Fp), lambda i, k: (k, 0)),   # h key tile (bf16)
            pl.BlockSpec((TM, TK), lambda i, k: (i, k)),   # adj tile (int8)
        ],
        out_specs=pl.BlockSpec((TM, Fp), lambda i, k: (i, 0)),
        scratch_shapes=[
            pltpu.VMEM((TM, Fp), jnp.float32),   # S @ h_padded accumulator
        ],
        compiler_params=pltpu.CompilerParams(
            dimension_semantics=("parallel", "arbitrary"),
            vmem_limit_bytes=vmem_limit,
        ),
    )(f1, f2_row, h, adj_i8)

    return out[:N, :Fout]


# ---------------- reference (plain JAX, f32) ----------------

def _reference(x, adj, W, a, alpha=0.2):
    Fout = W.shape[1]
    h = x @ W
    f1 = h @ a[:, :Fout].T
    f2 = h @ a[:, Fout:].T
    e = f1 + f2.T
    lrelu = jnp.where(e > 0, e, alpha * e)
    s = jnp.where(adj != 0, jnp.exp(-lrelu), 0.0)
    rowsum = s.sum(axis=1, keepdims=True)
    hp = (s @ h) / rowsum
    return jnp.where(hp > 0, hp, jnp.exp(hp) - 1.0)


# ---------------- main ----------------

if __name__ == "__main__":
    key = jax.random.PRNGKey(0)
    k_x, k_w, k_a, k_adj = jax.random.split(key, 4)

    # N=384 exercises multi-tile rows, multi-tile keys and row/key padding.
    N, Fin, Fout = 384, 16, 32
    alpha = 0.2

    x = jax.random.normal(k_x, (N, Fin), dtype=jnp.float32)

    # deterministic xavier_normal_ init (gain=1.414), matching module __init__
    def xavier_normal(k, shape, gain):
        fan_in, fan_out = shape[0], shape[1]
        std = gain * (2.0 / (fan_in + fan_out)) ** 0.5
        return std * jax.random.normal(k, shape, dtype=jnp.float32)

    W = xavier_normal(k_w, (Fin, Fout), 1.414)
    a = xavier_normal(k_a, (1, 2 * Fout), 1.414)

    # random adjacency with self-loops (every row has at least one edge)
    adj = (jax.random.uniform(k_adj, (N, N)) > 0.9).astype(jnp.float32)
    adj = jnp.maximum(adj, jnp.eye(N, dtype=jnp.float32))

    out = sp_graph_attention_layer(x, adj, W, a, alpha=alpha)
    out = jax.block_until_ready(out)

    ref = _reference(x, adj, W, a, alpha=alpha)
    assert out.shape == (N, Fout)
    # tolerance loosened vs. the f32 reference: h and s are streamed /
    # multiplied in bf16 (accumulation stays f32), typical error ~1e-3.
    assert jnp.allclose(out, ref, atol=3e-2, rtol=3e-2), float(
        jnp.max(jnp.abs(out - ref)))

    print("KERNEL_OK")
</pallas_src>

<mosaic_0001>
module attributes {stable_mosaic.version = 11 : i64} {
  func.func @_proj_kernel(%arg0: i32, %arg1: memref<128x24xf32, #tpu.memory_space<vmem>>, %arg2: memref<24x128xf32, #tpu.memory_space<vmem>>, %arg3: memref<1x128xf32, #tpu.memory_space<vmem>>, %arg4: memref<1x128xf32, #tpu.memory_space<vmem>>, %arg5: memref<128x128xbf16, #tpu.memory_space<vmem>>, %arg6: memref<128x1xf32, #tpu.memory_space<vmem>>, %arg7: memref<128x1xf32, #tpu.memory_space<vmem>>) attributes {dimension_semantics = [#tpu.dimension_semantics<parallel>], iteration_bounds = array<i64: 4>, scalar_prefetch = 0 : i64, scratch_operands = 0 : i64, tpu.core_type = #tpu.core_type<tc>, window_params = [{transform_indices = @transform_0, window_bounds = array<i64: 128, 24>}, {pipeline_mode = #tpu.pipeline_mode<synchronous>, transform_indices = @transform_1, window_bounds = array<i64: 24, 128>}, {pipeline_mode = #tpu.pipeline_mode<synchronous>, transform_indices = @transform_2, window_bounds = array<i64: 1, 128>}, {pipeline_mode = #tpu.pipeline_mode<synchronous>, transform_indices = @transform_3, window_bounds = array<i64: 1, 128>}, {transform_indices = @transform_4, window_bounds = array<i64: 128, 128>}, {transform_indices = @transform_5, window_bounds = array<i64: 128, 1>}, {transform_indices = @transform_6, window_bounds = array<i64: 128, 1>}]} {
    %c0 = arith.constant 0 : index
    %c0_0 = arith.constant 0 : index
    %0 = vector.load %arg1[%c0, %c0_0] : memref<128x24xf32, #tpu.memory_space<vmem>>, vector<128x24xf32>
    %c0_1 = arith.constant 0 : index
    %c0_2 = arith.constant 0 : index
    %1 = vector.load %arg2[%c0_1, %c0_2] : memref<24x128xf32, #tpu.memory_space<vmem>>, vector<24x128xf32>
    %cst = arith.constant dense<0.000000e+00> : vector<128x128xf32>
    %2 = tpu.matmul %0, %1, %cst {dimension_numbers = #tpu.dot_dimension_numbers<[1], [0], [0], [1], [0, 0, 1, 1], [], []>} : vector<128x24xf32>, vector<24x128xf32>, vector<128x128xf32> -> vector<128x128xf32>
    %c0_3 = arith.constant 0 : index
    %c0_4 = arith.constant 0 : index
    %3 = vector.load %arg3[%c0_3, %c0_4] : memref<1x128xf32, #tpu.memory_space<vmem>>, vector<1x128xf32>
    %4 = vector.broadcast %3 : vector<1x128xf32> to vector<128x128xf32>
    %5 = arith.mulf %2, %4 : vector<128x128xf32>
    %cst_5 = arith.constant dense<0.000000e+00> : vector<128xf32>
    %6 = vector.multi_reduction <add>, %5, %cst_5 [1] : vector<128x128xf32> to vector<128xf32>
    %7 = vector.shape_cast %6 : vector<128xf32> to vector<128x1xf32>
    %c0_6 = arith.constant 0 : index
    %c0_7 = arith.constant 0 : index
    %8 = vector.load %arg6[%c0_6, %c0_7] : memref<128x1xf32, #tpu.memory_space<vmem>>, vector<128x1xf32>
    tpu.vector_store %arg6[%c0_6, %c0_7], %7 {strides = array<i32>} : memref<128x1xf32, #tpu.memory_space<vmem>>, vector<128x1xf32>,
    %c0_8 = arith.constant 0 : index
    %c0_9 = arith.constant 0 : index
    %9 = vector.load %arg4[%c0_8, %c0_9] : memref<1x128xf32, #tpu.memory_space<vmem>>, vector<1x128xf32>
    %10 = vector.broadcast %9 : vector<1x128xf32> to vector<128x128xf32>
    %11 = arith.mulf %2, %10 : vector<128x128xf32>
    %cst_10 = arith.constant dense<0.000000e+00> : vector<128xf32>
    %12 = vector.multi_reduction <add>, %11, %cst_10 [1] : vector<128x128xf32> to vector<128xf32>
    %13 = vector.shape_cast %12 : vector<128xf32> to vector<128x1xf32>
    %c0_11 = arith.constant 0 : index
    %c0_12 = arith.constant 0 : index
    %14 = vector.load %arg7[%c0_11, %c0_12] : memref<128x1xf32, #tpu.memory_space<vmem>>, vector<128x1xf32>
    tpu.vector_store %arg7[%c0_11, %c0_12], %13 {strides = array<i32>} : memref<128x1xf32, #tpu.memory_space<vmem>>, vector<128x1xf32>,
    %15 = arith.truncf %2 : vector<128x128xf32> to vector<128x128xbf16>
    %c0_13 = arith.constant 0 : index
    %c0_14 = arith.constant 0 : index
    %16 = vector.load %arg5[%c0_13, %c0_14] : memref<128x128xbf16, #tpu.memory_space<vmem>>, vector<128x128xbf16>
    tpu.vector_store %arg5[%c0_13, %c0_14], %15 {strides = array<i32>} : memref<128x128xbf16, #tpu.memory_space<vmem>>, vector<128x128xbf16>,
    return
  }
  func.func @transform_0(%arg0: i32) -> (i32, i32) {
    %c0_i32 = arith.constant 0 : i32
    %c0_i32_0 = arith.constant 0 : i32
    return %arg0, %c0_i32 : i32, i32
  }
  func.func @transform_1(%arg0: i32) -> (i32, i32) {
    %c0_i32 = arith.constant 0 : i32
    %c0_i32_0 = arith.constant 0 : i32
    %c0_i32_1 = arith.constant 0 : i32
    return %c0_i32, %c0_i32_0 : i32, i32
  }
  func.func @transform_2(%arg0: i32) -> (i32, i32) {
    %c0_i32 = arith.constant 0 : i32
    %c0_i32_0 = arith.constant 0 : i32
    %c0_i32_1 = arith.constant 0 : i32
    return %c0_i32, %c0_i32_0 : i32, i32
  }
  func.func @transform_3(%arg0: i32) -> (i32, i32) {
    %c0_i32 = arith.constant 0 : i32
    %c0_i32_0 = arith.constant 0 : i32
    %c0_i32_1 = arith.constant 0 : i32
    return %c0_i32, %c0_i32_0 : i32, i32
  }
  func.func @transform_4(%arg0: i32) -> (i32, i32) {
    %c0_i32 = arith.constant 0 : i32
    %c0_i32_0 = arith.constant 0 : i32
    return %arg0, %c0_i32 : i32, i32
  }
  func.func @transform_5(%arg0: i32) -> (i32, i32) {
    %c0_i32 = arith.constant 0 : i32
    %c0_i32_0 = arith.constant 0 : i32
    return %arg0, %c0_i32 : i32, i32
  }
  func.func @transform_6(%arg0: i32) -> (i32, i32) {
    %c0_i32 = arith.constant 0 : i32
    %c0_i32_0 = arith.constant 0 : i32
    return %arg0, %c0_i32 : i32, i32
  }
}

</mosaic_0001>

<llo_original>
// kernel: tpu_custom_call.1
$region0: #{tpu_custom_call.1}
  #allocation0 [shape = 'u32[]', space=smem, size = 0x4, offset = 0x4, fixed_abs, tag = 'smem constant byte address 0x4 - core index']
  #allocation1 [shape = 'u32[72,128]{1,0:T(1,128)}', space=vmem, size = 0x9000, scoped, tag = 'internal scratch']
  %s0 = inlined_call_operand.vmem [shape: f32[512,24], index: 0, kind: input, shape index: {}]
  %s1 = inlined_call_operand.vmem [shape: f32[24,128], index: 1, kind: input, shape index: {}]
  %s2 = inlined_call_operand.vmem [shape: f32[1,128], index: 2, kind: input, shape index: {}]
  %s3 = inlined_call_operand.vmem [shape: f32[1,128], index: 3, kind: input, shape index: {}]
  %s4 = inlined_call_operand.hbm [shape: bf16[512,128], index: 4, kind: output, shape index: {0}]
  %s5 = inlined_call_operand.vmem [shape: f32[512,1], index: 5, kind: output, shape index: {1}]
  %s6 = inlined_call_operand.vmem [shape: f32[512,1], index: 6, kind: output, shape index: {2}]
  %7 = xla_tuple %s4, %s5, %s6
  %s8 = sld [smem:[#allocation0]]
  $region65: #{tpu_custom_call.1} parent=0
    _
  %s10 = ssub.s32 1, %s8
  %s11 = scalar_select 0, %s10, %s8
  $region1: #{tpu_custom_call.1} parent=0
    #allocation2 [shape = 'u8[65536]{0}', space=vmem, size = 0x10000, scoped, tag = 'output window, operand 0']
    #allocation3 [shape = 's32[2]{0}', space=sflag, size = 0x8, scoped, tag = 'scoped memory for tpu_custom_call.1']
    %12 = vsyncpa [#allocation3], 0
    %s13 = scalar_lea.sflag [#allocation3], 1
    %14 = vsyncpa %s13, 0
    loop: start=0, step=1, limit=6
    $region2: #{tpu_custom_call.1} parent=1 // loop_pre_header
      _
    $region3: #{tpu_custom_call.1} parent=1 // loop_header
      %s16 = sphi 0, %s20
      %p17 = scmp.ge.s32.totalorder %s16, 6
      %s26 = sphi 0, %s28
      %s29 = sphi 0, %s26
      %s30 = sphi 0, %s29
      %s46 = sphi 0, %s30
      %s50 = sphi 0, %s50
      %s52 = sphi 0, %s50
      %s53 = sphi 0, %s52
      %s67 = sphi 0, %s53
      %s71 = sphi 0, %s71
      %s73 = sphi 0, %s71
      %s74 = sphi 0, %s73
      %s88 = sphi 0, %s74
      %s92 = sphi 0, %s92
      %s94 = sphi 0, %s92
      %s95 = sphi 0, %s94
      %s109 = sphi 0, %s95
      %s115 = sphi 0, %s117
      %s118 = sphi 0, %s115
      %s119 = sphi 0, %s118
      %s135 = sphi 0, %s119
      %s141 = sphi 0, %s143
      %s144 = sphi 0, %s141
      %s145 = sphi 0, %s144
      %s161 = sphi 0, %s145
      %s167 = sphi 0, %s169
      %s170 = sphi 0, %s167
      %s171 = sphi 0, %s170
      %s187 = sphi 0, %s171
    $region4: #{tpu_custom_call.1} parent=1 // loop_header_branch
      %19 = sbr.rel (%p17) target = $region8
    $region5: #{tpu_custom_call.1} parent=1 // loop_body
      %s21 = ssub.s32 %s16, 1
      %s22 = ssub.s32 %s16, 2
      %s23 = sadd.s32 %s16, 1
      %s24 = ssub.s32 %s16, %s23
      %p25 = scmp.eq.s32.totalorder %s24, 0
      %s27 = sadd.s32 %s26, 1
      %s28 = scalar_select %p25, %s26, %s27
      %p31 = pneg %p25
      %p32 = scmp.eq.s32.totalorder %s16, 3
      %p33 = por %p31, %p32
      %p34 = scmp.ne.s32.totalorder %s26, %s29
      %p35 = scmp.eq.s32.totalorder %s16, 0
      %p36 = por %p34, %p35
      %p37 = scmp.ne.s32.totalorder %s26, %s29
      %p38 = scmp.eq.s32.totalorder %s21, 3
      %p39 = por %p37, %p38
      %p40 = scmp.ne.s32.totalorder %s29, %s30
      %p41 = scmp.eq.s32.totalorder %s21, 0
      %p42 = por %p40, %p41
      %p43 = scmp.ne.s32.totalorder %s29, %s30
      %p44 = scmp.eq.s32.totalorder %s22, 3
      %p45 = por %p43, %p44
      %p47 = scmp.ne.s32.totalorder %s30, %s46
      %p48 = scmp.eq.s32.totalorder %s22, 0
      %p49 = por %p47, %p48
      %s51 = sadd.s32 %s50, 1
      %p54 = scmp.eq.s32.totalorder %s16, 3
      %p55 = scmp.ne.s32.totalorder %s50, %s52
      %p56 = scmp.eq.s32.totalorder %s16, 0
      %p57 = por %p55, %p56
      %p58 = scmp.ne.s32.totalorder %s50, %s52
      %p59 = scmp.eq.s32.totalorder %s21, 3
      %p60 = por %p58, %p59
      %p61 = scmp.ne.s32.totalorder %s52, %s53
      %p62 = scmp.eq.s32.totalorder %s21, 0
      %p63 = por %p61, %p62
      %p64 = scmp.ne.s32.totalorder %s52, %s53
      %p65 = scmp.eq.s32.totalorder %s22, 3
      %p66 = por %p64, %p65
      %p68 = scmp.ne.s32.totalorder %s53, %s67
      %p69 = scmp.eq.s32.totalorder %s22, 0
      %p70 = por %p68, %p69
      %s72 = sadd.s32 %s71, 1
      %p75 = scmp.eq.s32.totalorder %s16, 3
      %p76 = scmp.ne.s32.totalorder %s71, %s73
      %p77 = scmp.eq.s32.totalorder %s16, 0
      %p78 = por %p76, %p77
      %p79 = scmp.ne.s32.totalorder %s71, %s73
      %p80 = scmp.eq.s32.totalorder %s21, 3
      %p81 = por %p79, %p80
      %p82 = scmp.ne.s32.totalorder %s73, %s74
      %p83 = scmp.eq.s32.totalorder %s21, 0
      %p84 = por %p82, %p83
      %p85 = scmp.ne.s32.totalorder %s73, %s74
      %p86 = scmp.eq.s32.totalorder %s22, 3
      %p87 = por %p85, %p86
      %p89 = scmp.ne.s32.totalorder %s74, %s88
      %p90 = scmp.eq.s32.totalorder %s22, 0
      %p91 = por %p89, %p90
      %s93 = sadd.s32 %s92, 1
      %p96 = scmp.eq.s32.totalorder %s16, 3
      %p97 = scmp.ne.s32.totalorder %s92, %s94
      %p98 = scmp.eq.s32.totalorder %s16, 0
      %p99 = por %p97, %p98
      %p100 = scmp.ne.s32.totalorder %s92, %s94
      %p101 = scmp.eq.s32.totalorder %s21, 3
      %p102 = por %p100, %p101
      %p103 = scmp.ne.s32.totalorder %s94, %s95
      %p104 = scmp.eq.s32.totalorder %s21, 0
      %p105 = por %p103, %p104
      %p106 = scmp.ne.s32.totalorder %s94, %s95
      %p107 = scmp.eq.s32.totalorder %s22, 3
      %p108 = por %p106, %p107
      %p110 = scmp.ne.s32.totalorder %s95, %s109
      %p111 = scmp.eq.s32.totalorder %s22, 0
      %p112 = por %p110, %p111
      %s113 = ssub.s32 %s16, %s23
      %p114 = scmp.eq.s32.totalorder %s113, 0
      %s116 = sadd.s32 %s115, 1
      %s117 = scalar_select %p114, %s115, %s116
      %p120 = pneg %p114
      %p121 = scmp.eq.s32.totalorder %s16, 3
      %p122 = por %p120, %p121
      %p123 = scmp.ne.s32.totalorder %s115, %s118
      %p124 = scmp.eq.s32.totalorder %s16, 0
      %p125 = por %p123, %p124
      %p126 = scmp.ne.s32.totalorder %s115, %s118
      %p127 = scmp.eq.s32.totalorder %s21, 3
      %p128 = por %p126, %p127
      %p129 = scmp.ne.s32.totalorder %s118, %s119
      %p130 = scmp.eq.s32.totalorder %s21, 0
      %p131 = por %p129, %p130
      %p132 = scmp.ne.s32.totalorder %s118, %s119
      %p133 = scmp.eq.s32.totalorder %s22, 3
      %p134 = por %p132, %p133
      %p136 = scmp.ne.s32.totalorder %s119, %s135
      %p137 = scmp.eq.s32.totalorder %s22, 0
      %p138 = por %p136, %p137
      %s139 = ssub.s32 %s16, %s23
      %p140 = scmp.eq.s32.totalorder %s139, 0
      %s142 = sadd.s32 %s141, 1
      %s143 = scalar_select %p140, %s141, %s142
      %p146 = pneg %p140
      %p147 = scmp.eq.s32.totalorder %s16, 3
      %p148 = por %p146, %p147
      %p149 = scmp.ne.s32.totalorder %s141, %s144
      %p150 = scmp.eq.s32.totalorder %s16, 0
      %p151 = por %p149, %p150
      %p152 = scmp.ne.s32.totalorder %s141, %s144
      %p153 = scmp.eq.s32.totalorder %s21, 3
      %p154 = por %p152, %p153
      %p155 = scmp.ne.s32.totalorder %s144, %s145
      %p156 = scmp.eq.s32.totalorder %s21, 0
      %p157 = por %p155, %p156
      %p158 = scmp.ne.s32.totalorder %s144, %s145
      %p159 = scmp.eq.s32.totalorder %s22, 3
      %p160 = por %p158, %p159
      %p162 = scmp.ne.s32.totalorder %s145, %s161
      %p163 = scmp.eq.s32.totalorder %s22, 0
      %p164 = por %p162, %p163
      %s165 = ssub.s32 %s16, %s23
      %p166 = scmp.eq.s32.totalorder %s165, 0
      %s168 = sadd.s32 %s167, 1
      %s169 = scalar_select %p166, %s167, %s168
      %p172 = pneg %p166
      %p173 = scmp.eq.s32.totalorder %s16, 3
      %p174 = por %p172, %p173
      %p175 = scmp.ne.s32.totalorder %s167, %s170
      %p176 = scmp.eq.s32.totalorder %s16, 0
      %p177 = por %p175, %p176
      %p178 = scmp.ne.s32.totalorder %s167, %s170
      %p179 = scmp.eq.s32.totalorder %s21, 3
      %p180 = por %p178, %p179
      %p181 = scmp.ne.s32.totalorder %s170, %s171
      %p182 = scmp.eq.s32.totalorder %s21, 0
      %p183 = por %p181, %p182
      %p184 = scmp.ne.s32.totalorder %s170, %s171
      %p185 = scmp.eq.s32.totalorder %s22, 3
      %p186 = por %p184, %p185
      %p188 = scmp.ne.s32.totalorder %s171, %s187
      %p189 = scmp.eq.s32.totalorder %s22, 0
      %p190 = por %p188, %p189
      %p191 = scmp.le.s32.totalorder 1, %s16
      %p192 = scmp.lt.s32.totalorder %s16, 5
      %p193 = pnand %p191, %p192
      %p194 = pneg %p193
      // Predicated region
      $region9: #{tpu_custom_call.1} parent=5 // pred_check
        _
      $region10: #{tpu_custom_call.1} parent=5 // pred_check_branch
        %196 = sbr.rel (%p193) target = $region12
      $region11: #{tpu_custom_call.1} parent=5 // pred_region
        %s197 = ssub.s32 %s16, 1
        // Predicated region
        $region13: #{tpu_custom_call.1} parent=11 // pred_check
          %p198 = pneg %p63
        $region14: #{tpu_custom_call.1} parent=11 // pred_check_branch
          %200 = sbr.rel (%p198) target = $region16
        $region15: #{tpu_custom_call.1} parent=11 // pred_region
          _
        $region16: #{tpu_custom_call.1} parent=11 // pred_fallthru
          _
        // Predicated region
        $region17: #{tpu_custom_call.1} parent=11 // pred_check
          %p201 = pneg %p84
        $region18: #{tpu_custom_call.1} parent=11 // pred_check_branch
          %203 = sbr.rel (%p201) target = $region20
        $region19: #{tpu_custom_call.1} parent=11 // pred_region
          _
        $region20: #{tpu_custom_call.1} parent=11 // pred_fallthru
          _
        // Predicated region
        $region21: #{tpu_custom_call.1} parent=11 // pred_check
          %p204 = pneg %p105
        $region22: #{tpu_custom_call.1} parent=11 // pred_check_branch
          %206 = sbr.rel (%p204) target = $region24
        $region23: #{tpu_custom_call.1} parent=11 // pred_region
          _
        $region24: #{tpu_custom_call.1} parent=11 // pred_fallthru
          _
      $region12: #{tpu_custom_call.1} parent=5 // pred_fallthru
        _
      %p207 = scmp.lt.s32.totalorder %s16, 4
      // Predicated region
      $region25: #{tpu_custom_call.1} parent=5 // pred_check
        %p208 = pneg %p207
      $region26: #{tpu_custom_call.1} parent=5 // pred_check_branch
        %210 = sbr.rel (%p208) target = $region28
      $region27: #{tpu_custom_call.1} parent=5 // pred_region
        // Predicated region
        $region29: #{tpu_custom_call.1} parent=27 // pred_check
          %p211 = pneg %p36
        $region30: #{tpu_custom_call.1} parent=27 // pred_check_branch
          %213 = sbr.rel (%p211) target = $region32
        $region31: #{tpu_custom_call.1} parent=27 // pred_region
          %s214 = smul.u32 16, %s16
          %p215 = scmp.lt.s32.totalorder %s214, 63
          %s216 = scalar_select %p215, %s214, 63
          %s217 = smul.addr %s216, 8
          %s218 = scalar_lea.vmem %s0, %s217
          %s219 = smul.u32 16, %s16
        $region32: #{tpu_custom_call.1} parent=27 // pred_fallthru
          _
      $region28: #{tpu_custom_call.1} parent=5 // pred_fallthru
        _
      %p220 = scmp.le.s32.totalorder 1, %s16
      %p221 = scmp.lt.s32.totalorder %s16, 5
      %p222 = pnand %p220, %p221
      %p223 = pneg %p222
      // Predicated region
      $region33: #{tpu_custom_call.1} parent=5 // pred_check
        _
      $region34: #{tpu_custom_call.1} parent=5 // pred_check_branch
        %225 = sbr.rel (%p222) target = $region36
      $region35: #{tpu_custom_call.1} parent=5 // pred_region
        %s226 = ssub.s32 %s16, 1
        %s227 = smul.u32 16, %s21
        %p228 = scmp.lt.s32.totalorder %s227, 63
        %s229 = scalar_select %p228, %s227, 63
        %s230 = smul.addr %s229, 8
        %s231 = scalar_lea.vmem %s0, %s230
        %p232 = pneg %p42
        %p233 = pneg %p39
        %p234 = pneg %p63
        %p235 = pneg %p60
        %p236 = pneg %p84
        %p237 = pneg %p81
        %p238 = pneg %p105
        %p239 = pneg %p102
        %p240 = pneg %p131
        %p241 = pneg %p128
        %s242 = sand.u32 %s118, 1
        %s243 = scalar_lea.sflag [#allocation3], %s242
        %s244 = sand.u32 %s118, 1
        %s245 = smul.addr %s244, 64
        %s246 = scalar_lea.vmem [#allocation2], %s245
        %p247 = pneg %p157
        %p248 = pneg %p154
        %s249 = smul.u32 16, %s21
        %p250 = scmp.lt.s32.totalorder %s249, 63
        %s251 = scalar_select %p250, %s249, 63
        %s252 = smul.addr %s251, 8
        %s253 = scalar_lea.vmem %s5, %s252
        %p254 = pneg %p183
        %p255 = pneg %p180
        %s256 = smul.u32 16, %s21
        %p257 = scmp.lt.s32.totalorder %s256, 63
        %s258 = scalar_select %p257, %s256, 63
        %s259 = smul.addr %s258, 8
        %s260 = scalar_lea.vmem %s6, %s259
        %s261 = smul.u32 16, %s21
        %p262 = scmp.lt.s32.totalorder %s261, 63
        %s263 = scalar_select %p262, %s261, 63
        %s264 = smul.addr %s263, 8
        %s265 = scalar_lea.vmem %s0, %s264
        %s266 = smul.u32 16, %s21
        %s267 = smul.u32 16, %s21
        %s268 = smul.u32 16, %s21
        %p269 = scmp.lt.s32.totalorder %s268, 63
        %s270 = scalar_select %p269, %s268, 63
        %s271 = smul.addr %s270, 8
        %s272 = scalar_lea.vmem %s5, %s271
        %s273 = smul.u32 16, %s21
        %s274 = smul.u32 16, %s21
        %p275 = scmp.lt.s32.totalorder %s274, 63
        %s276 = scalar_select %p275, %s274, 63
        %s277 = smul.addr %s276, 8
        %s278 = scalar_lea.vmem %s6, %s277
        %s279 = smul.u32 16, %s21
        %v280 = vld [vmem:[%s265] sm:$0xff]
        %v281 = vld [vmem:[%s265 + $0x8] sm:$0xff]
        %v282 = vld [vmem:[%s265 + $0x10] sm:$0xff]
        %v283 = vld [vmem:[%s265 + $0x18] sm:$0xff]
        %v284 = vld [vmem:[%s265 + $0x20] sm:$0xff]
        %v285 = vld [vmem:[%s265 + $0x28] sm:$0xff]
        %v286 = vld [vmem:[%s265 + $0x30] sm:$0xff]
        %v287 = vld [vmem:[%s265 + $0x38] sm:$0xff]
        %v288 = vld [vmem:[%s265 + $0x40] sm:$0xff]
        %v289 = vld [vmem:[%s265 + $0x48] sm:$0xff]
        %v290 = vld [vmem:[%s265 + $0x50] sm:$0xff]
        %v291 = vld [vmem:[%s265 + $0x58] sm:$0xff]
        %v292 = vld [vmem:[%s265 + $0x60] sm:$0xff]
        %v293 = vld [vmem:[%s265 + $0x68] sm:$0xff]
        %v294 = vld [vmem:[%s265 + $0x70] sm:$0xff]
        %v295 = vld [vmem:[%s265 + $0x78] sm:$0xff]
        %v296 = vld [vmem:[%s1] sm:$0xff]
        %v297 = vld [vmem:[%s1 + $0x8] sm:$0xff]
        %v298 = vld [vmem:[%s1 + $0x10] sm:$0xff]
        %vm299 = vcmask 195584
        %v301 = vsel %vm299, %v280, 0
        %v304 = vsel %vm299, %v281, 0
        %v307 = vsel %vm299, %v282, 0
        %v310 = vsel %vm299, %v283, 0
        %v313 = vsel %vm299, %v284, 0
        %v316 = vsel %vm299, %v285, 0
        %v319 = vsel %vm299, %v286, 0
        %v322 = vsel %vm299, %v287, 0
        %v325 = vsel %vm299, %v288, 0
        %v328 = vsel %vm299, %v289, 0
        %v331 = vsel %vm299, %v290, 0
        %v334 = vsel %vm299, %v291, 0
        %v337 = vsel %vm299, %v292, 0
        %v340 = vsel %vm299, %v293, 0
        %v343 = vsel %vm299, %v294, 0
        %v346 = vsel %vm299, %v295, 0
        %348 = vmatpush.msra.mxu0 0.0
        %349 = vmatpush.msra.mxu0 0.0
        %350 = vmatpush.msra.mxu0 0.0
        %351 = vmatpush.msra.mxu0 0.0
        %352 = vmatpush.msra.mxu0 0.0
        %353 = vmatpush.msra.mxu0 0.0
        %354 = vmatpush.msra.mxu0 0.0
        %355 = vmatpush.msra.mxu0 0.0
        %356 = vmatpush.msra.mxu0 0.0
        %357 = vmatpush.msra.mxu0 0.0
        %358 = vmatpush.msra.mxu0 0.0
        %359 = vmatpush.msra.mxu0 0.0
        %360 = vmatpush.msra.mxu0 0.0
        %361 = vmatpush.msra.mxu0 %v298
        %362 = vmatpush.msra.mxu0 %v297
        %363 = vmatpush.msra.mxu0 %v296
        %364 = vmatmul.f32.gmra.mxu0 %v301
        %v365 = vpop.f32.mrf.mxu0
        %v366 = vadd.f32 0.0, %v365
        %367 = vmatmul.f32.gmra.mxu0 %v304
        %v368 = vpop.f32.mrf.mxu0
        %v369 = vadd.f32 0.0, %v368
        %370 = vmatmul.f32.gmra.mxu0 %v307
        %v371 = vpop.f32.mrf.mxu0
        %v372 = vadd.f32 0.0, %v371
        %373 = vmatmul.f32.gmra.mxu0 %v310
        %v374 = vpop.f32.mrf.mxu0
        %v375 = vadd.f32 0.0, %v374
        %376 = vmatmul.f32.gmra.mxu0 %v313
        %v377 = vpop.f32.mrf.mxu0
        %v378 = vadd.f32 0.0, %v377
        %379 = vmatmul.f32.gmra.mxu0 %v316
        %v380 = vpop.f32.mrf.mxu0
        %v381 = vadd.f32 0.0, %v380
        %382 = vmatmul.f32.gmra.mxu0 %v319
        %v383 = vpop.f32.mrf.mxu0
        %v384 = vadd.f32 0.0, %v383
        %385 = vmatmul.f32.gmra.mxu0 %v322
        %v386 = vpop.f32.mrf.mxu0
        %v387 = vadd.f32 0.0, %v386
        %388 = vmatmul.f32.gmra.mxu0 %v325
        %v389 = vpop.f32.mrf.mxu0
        %v390 = vadd.f32 0.0, %v389
        %391 = vmatmul.f32.gmra.mxu0 %v328
        %v392 = vpop.f32.mrf.mxu0
        %v393 = vadd.f32 0.0, %v392
        %394 = vmatmul.f32.gmra.mxu0 %v331
        %v395 = vpop.f32.mrf.mxu0
        %v396 = vadd.f32 0.0, %v395
        %397 = vmatmul.f32.gmra.mxu0 %v334
        %v398 = vpop.f32.mrf.mxu0
        %v399 = vadd.f32 0.0, %v398
        %400 = vmatmul.f32.gmra.mxu0 %v337
        %v401 = vpop.f32.mrf.mxu0
        %v402 = vadd.f32 0.0, %v401
        %403 = vmatmul.f32.gmra.mxu0 %v340
        %v404 = vpop.f32.mrf.mxu0
        %v405 = vadd.f32 0.0, %v404
        %406 = vmatmul.f32.gmra.mxu0 %v343
        %v407 = vpop.f32.mrf.mxu0
        %v408 = vadd.f32 0.0, %v407
        %409 = vmatmul.f32.gmra.mxu0 %v346
        %v410 = vpop.f32.mrf.mxu0
        %v411 = vadd.f32 0.0, %v410
        %412 = vdwg.mxu0
        %v413 = vld [vmem:[%s2] sm:$0x1]
        %v415 = vperm.slane %v413, 0
        %v417 = vmul.f32 %v366, %v415
        %v418 = vmul.f32 %v369, %v415
        %v419 = vmul.f32 %v372, %v415
        %v420 = vmul.f32 %v375, %v415
        %v421 = vmul.f32 %v378, %v415
        %v422 = vmul.f32 %v381, %v415
        %v423 = vmul.f32 %v384, %v415
        %v424 = vmul.f32 %v387, %v415
        %v425 = vmul.f32 %v390, %v415
        %v426 = vmul.f32 %v393, %v415
        %v427 = vmul.f32 %v396, %v415
        %v428 = vmul.f32 %v399, %v415
        %v429 = vmul.f32 %v402, %v415
        %v430 = vmul.f32 %v405, %v415
        %v431 = vmul.f32 %v408, %v415
        %v432 = vmul.f32 %v411, %v415
        %433 = vadd.xlane.f32.xlu0 %v417
        %v434 = vpop.xlane.xlu0 %433
        %435 = vadd.xlane.f32.xlu0 %v418
        %v436 = vpop.xlane.xlu0 %435
        %437 = vadd.xlane.f32.xlu0 %v419
        %v438 = vpop.xlane.xlu0 %437
        %439 = vadd.xlane.f32.xlu0 %v420
        %v440 = vpop.xlane.xlu0 %439
        %441 = vadd.xlane.f32.xlu0 %v421
        %v442 = vpop.xlane.xlu0 %441
        %443 = vadd.xlane.f32.xlu0 %v422
        %v444 = vpop.xlane.xlu0 %443
        %445 = vadd.xlane.f32.xlu0 %v423
        %v446 = vpop.xlane.xlu0 %445
        %447 = vadd.xlane.f32.xlu0 %v424
        %v448 = vpop.xlane.xlu0 %447
        %449 = vadd.xlane.f32.xlu0 %v425
        %v450 = vpop.xlane.xlu0 %449
        %451 = vadd.xlane.f32.xlu0 %v426
        %v452 = vpop.xlane.xlu0 %451
        %453 = vadd.xlane.f32.xlu0 %v427
        %v454 = vpop.xlane.xlu0 %453
        %455 = vadd.xlane.f32.xlu0 %v428
        %v456 = vpop.xlane.xlu0 %455
        %457 = vadd.xlane.f32.xlu0 %v429
        %v458 = vpop.xlane.xlu0 %457
        %459 = vadd.xlane.f32.xlu0 %v430
        %v460 = vpop.xlane.xlu0 %459
        %461 = vadd.xlane.f32.xlu0 %v431
        %v462 = vpop.xlane.xlu0 %461
        %463 = vadd.xlane.f32.xlu0 %v432
        %v464 = vpop.xlane.xlu0 %463
        %vm465 = vcmask 7168
        %466 = vst.msk [vmem:[%s272] sm:$0xff] %vm465, %v434
        %467 = vst.msk [vmem:[%s272 + $0x8] sm:$0xff] %vm465, %v436
        %468 = vst.msk [vmem:[%s272 + $0x10] sm:$0xff] %vm465, %v438
        %469 = vst.msk [vmem:[%s272 + $0x18] sm:$0xff] %vm465, %v440
        %470 = vst.msk [vmem:[%s272 + $0x20] sm:$0xff] %vm465, %v442
        %471 = vst.msk [vmem:[%s272 + $0x28] sm:$0xff] %vm465, %v444
        %472 = vst.msk [vmem:[%s272 + $0x30] sm:$0xff] %vm465, %v446
        %473 = vst.msk [vmem:[%s272 + $0x38] sm:$0xff] %vm465, %v448
        %474 = vst.msk [vmem:[%s272 + $0x40] sm:$0xff] %vm465, %v450
        %475 = vst.msk [vmem:[%s272 + $0x48] sm:$0xff] %vm465, %v452
        %476 = vst.msk [vmem:[%s272 + $0x50] sm:$0xff] %vm465, %v454
        %477 = vst.msk [vmem:[%s272 + $0x58] sm:$0xff] %vm465, %v456
        %478 = vst.msk [vmem:[%s272 + $0x60] sm:$0xff] %vm465, %v458
        %479 = vst.msk [vmem:[%s272 + $0x68] sm:$0xff] %vm465, %v460
        %480 = vst.msk [vmem:[%s272 + $0x70] sm:$0xff] %vm465, %v462
        %481 = vst.msk [vmem:[%s272 + $0x78] sm:$0xff] %vm465, %v464
        %v482 = vld [vmem:[%s3] sm:$0x1]
        %v484 = vperm.slane %v482, 0
        %v486 = vmul.f32 %v366, %v484
        %v487 = vmul.f32 %v369, %v484
        %v488 = vmul.f32 %v372, %v484
        %v489 = vmul.f32 %v375, %v484
        %v490 = vmul.f32 %v378, %v484
        %v491 = vmul.f32 %v381, %v484
        %v492 = vmul.f32 %v384, %v484
        %v493 = vmul.f32 %v387, %v484
        %v494 = vmul.f32 %v390, %v484
        %v495 = vmul.f32 %v393, %v484
        %v496 = vmul.f32 %v396, %v484
        %v497 = vmul.f32 %v399, %v484
        %v498 = vmul.f32 %v402, %v484
        %v499 = vmul.f32 %v405, %v484
        %v500 = vmul.f32 %v408, %v484
        %v501 = vmul.f32 %v411, %v484
        %502 = vadd.xlane.f32.xlu0 %v486
        %v503 = vpop.xlane.xlu0 %502
        %504 = vadd.xlane.f32.xlu0 %v487
        %v505 = vpop.xlane.xlu0 %504
        %506 = vadd.xlane.f32.xlu0 %v488
        %v507 = vpop.xlane.xlu0 %506
        %508 = vadd.xlane.f32.xlu0 %v489
        %v509 = vpop.xlane.xlu0 %508
        %510 = vadd.xlane.f32.xlu0 %v490
        %v511 = vpop.xlane.xlu0 %510
        %512 = vadd.xlane.f32.xlu0 %v491
        %v513 = vpop.xlane.xlu0 %512
        %514 = vadd.xlane.f32.xlu0 %v492
        %v515 = vpop.xlane.xlu0 %514
        %516 = vadd.xlane.f32.xlu0 %v493
        %v517 = vpop.xlane.xlu0 %516
        %518 = vadd.xlane.f32.xlu0 %v494
        %v519 = vpop.xlane.xlu0 %518
        %520 = vadd.xlane.f32.xlu0 %v495
        %v521 = vpop.xlane.xlu0 %520
        %522 = vadd.xlane.f32.xlu0 %v496
        %v523 = vpop.xlane.xlu0 %522
        %524 = vadd.xlane.f32.xlu0 %v497
        %v525 = vpop.xlane.xlu0 %524
        %526 = vadd.xlane.f32.xlu0 %v498
        %v527 = vpop.xlane.xlu0 %526
        %528 = vadd.xlane.f32.xlu0 %v499
        %v529 = vpop.xlane.xlu0 %528
        %530 = vadd.xlane.f32.xlu0 %v500
        %v531 = vpop.xlane.xlu0 %530
        %532 = vadd.xlane.f32.xlu0 %v501
        %v533 = vpop.xlane.xlu0 %532
        %534 = vst.msk [vmem:[%s278] sm:$0xff] %vm465, %v503
        %535 = vst.msk [vmem:[%s278 + $0x8] sm:$0xff] %vm465, %v505
        %536 = vst.msk [vmem:[%s278 + $0x10] sm:$0xff] %vm465, %v507
        %537 = vst.msk [vmem:[%s278 + $0x18] sm:$0xff] %vm465, %v509
        %538 = vst.msk [vmem:[%s278 + $0x20] sm:$0xff] %vm465, %v511
        %539 = vst.msk [vmem:[%s278 + $0x28] sm:$0xff] %vm465, %v513
        %540 = vst.msk [vmem:[%s278 + $0x30] sm:$0xff] %vm465, %v515
        %541 = vst.msk [vmem:[%s278 + $0x38] sm:$0xff] %vm465, %v517
        %542 = vst.msk [vmem:[%s278 + $0x40] sm:$0xff] %vm465, %v519
        %543 = vst.msk [vmem:[%s278 + $0x48] sm:$0xff] %vm465, %v521
        %544 = vst.msk [vmem:[%s278 + $0x50] sm:$0xff] %vm465, %v523
        %545 = vst.msk [vmem:[%s278 + $0x58] sm:$0xff] %vm465, %v525
        %546 = vst.msk [vmem:[%s278 + $0x60] sm:$0xff] %vm465, %v527
        %547 = vst.msk [vmem:[%s278 + $0x68] sm:$0xff] %vm465, %v529
        %548 = vst.msk [vmem:[%s278 + $0x70] sm:$0xff] %vm465, %v531
        %549 = vst.msk [vmem:[%s278 + $0x78] sm:$0xff] %vm465, %v533
        %v550 = vpack.c.bf16 %v366, %v366
        %v551 = vpack.c.bf16 %v369, %v369
        %v552 = vpack.c.bf16 %v372, %v372
        %v553 = vpack.c.bf16 %v375, %v375
        %v554 = vpack.c.bf16 %v378, %v378
        %v555 = vpack.c.bf16 %v381, %v381
        %v556 = vpack.c.bf16 %v384, %v384
        %v557 = vpack.c.bf16 %v387, %v387
        %v558 = vpack.c.bf16 %v390, %v390
        %v559 = vpack.c.bf16 %v393, %v393
        %v560 = vpack.c.bf16 %v396, %v396
        %v561 = vpack.c.bf16 %v399, %v399
        %v562 = vpack.c.bf16 %v402, %v402
        %v563 = vpack.c.bf16 %v405, %v405
        %v564 = vpack.c.bf16 %v408, %v408
        %v565 = vpack.c.bf16 %v411, %v411
        %566 = vst [vmem:[%s246] sm:$0xf] %v550
        %567 = vst [vmem:[%s246 + $0x4] sm:$0xf] %v551
        %568 = vst [vmem:[%s246 + $0x8] sm:$0xf] %v552
        %569 = vst [vmem:[%s246 + $0xc] sm:$0xf] %v553
        %570 = vst [vmem:[%s246 + $0x10] sm:$0xf] %v554
        %571 = vst [vmem:[%s246 + $0x14] sm:$0xf] %v555
        %572 = vst [vmem:[%s246 + $0x18] sm:$0xf] %v556
        %573 = vst [vmem:[%s246 + $0x1c] sm:$0xf] %v557
        %574 = vst [vmem:[%s246 + $0x20] sm:$0xf] %v558
        %575 = vst [vmem:[%s246 + $0x24] sm:$0xf] %v559
        %576 = vst [vmem:[%s246 + $0x28] sm:$0xf] %v560
        %577 = vst [vmem:[%s246 + $0x2c] sm:$0xf] %v561
        %578 = vst [vmem:[%s246 + $0x30] sm:$0xf] %v562
        %579 = vst [vmem:[%s246 + $0x34] sm:$0xf] %v563
        %580 = vst [vmem:[%s246 + $0x38] sm:$0xf] %v564
        %581 = vst [vmem:[%s246 + $0x3c] sm:$0xf] %v565
        %s582 = sand.u32 %s118, 1
        %s583 = scalar_lea.sflag [#allocation3], %s582
        %s584 = sand.u32 %s118, 1
        %s585 = smul.addr %s584, 64
        %s586 = scalar_lea.vmem [#allocation2], %s585
        %s587 = smul.u32 16, %s21
        %p588 = scmp.lt.s32.totalorder %s587, 63
        %s589 = scalar_select %p588, %s587, 63
        %s590 = smul.addr %s589, 8
        %s591 = scalar_lea.vmem %s5, %s590
        %s592 = smul.u32 16, %s21
        %p593 = scmp.lt.s32.totalorder %s592, 63
        %s594 = scalar_select %p593, %s592, 63
        %s595 = smul.addr %s594, 8
        %s596 = scalar_lea.vmem %s6, %s595
        // Predicated region
        $region37: #{tpu_custom_call.1} parent=35 // pred_check
          %p597 = pneg %p128
        $region38: #{tpu_custom_call.1} parent=35 // pred_check_branch
          %599 = sbr.rel (%p597) target = $region40
        $region39: #{tpu_custom_call.1} parent=35 // pred_region
          %s600 = smul.u32 16, %s21
          %602 = vsyncadd %s583, 0
          %s603 = smul.addr %s600, 4
          %s604 = scalar_lea.hbm %s4, %s603
          %s605 = sshll.u32 %s586, 4
          %s606 = int_to_ptr.vmem [resolvable:$true] %s605
          %s607 = sshll.u32 %s604, 4
          %s608 = int_to_ptr.hbm [resolvable:$true] %s607
          %613 = dma.vmem_to_hbm [thread:$0]  %s606, 1024, %s608, %s583, 64, 64, 4
        $region40: #{tpu_custom_call.1} parent=35 // pred_fallthru
          _
        // Predicated region
        $region41: #{tpu_custom_call.1} parent=35 // pred_check
          %p614 = pneg %p154
        $region42: #{tpu_custom_call.1} parent=35 // pred_check_branch
          %616 = sbr.rel (%p614) target = $region44
        $region43: #{tpu_custom_call.1} parent=35 // pred_region
          %s617 = smul.u32 16, %s21
        $region44: #{tpu_custom_call.1} parent=35 // pred_fallthru
          _
        // Predicated region
        $region45: #{tpu_custom_call.1} parent=35 // pred_check
          %p618 = pneg %p180
        $region46: #{tpu_custom_call.1} parent=35 // pred_check_branch
          %620 = sbr.rel (%p618) target = $region48
        $region47: #{tpu_custom_call.1} parent=35 // pred_region
          %s621 = smul.u32 16, %s21
        $region48: #{tpu_custom_call.1} parent=35 // pred_fallthru
          _
      $region36: #{tpu_custom_call.1} parent=5 // pred_fallthru
        _
      %p622 = scmp.le.s32.totalorder 2, %s16
      // Predicated region
      $region49: #{tpu_custom_call.1} parent=5 // pred_check
        %p623 = pneg %p622
      $region50: #{tpu_custom_call.1} parent=5 // pred_check_branch
        %625 = sbr.rel (%p623) target = $region52
      $region51: #{tpu_custom_call.1} parent=5 // pred_region
        %s626 = ssub.s32 %s16, 2
        // Predicated region
        $region53: #{tpu_custom_call.1} parent=51 // pred_check
          %p627 = pneg %p134
        $region54: #{tpu_custom_call.1} parent=51 // pred_check_branch
          %629 = sbr.rel (%p627) target = $region56
        $region55: #{tpu_custom_call.1} parent=51 // pred_region
          %s630 = sand.u32 %s119, 1
          %s631 = scalar_lea.sflag [#allocation3], %s630
          %s632 = sand.u32 %s119, 1
          %s633 = smul.addr %s632, 64
          %s634 = scalar_lea.vmem [#allocation2], %s633
          %636 = dma.done %s631, 1024
        $region56: #{tpu_custom_call.1} parent=51 // pred_fallthru
          _
        // Predicated region
        $region57: #{tpu_custom_call.1} parent=51 // pred_check
          %p637 = pneg %p160
        $region58: #{tpu_custom_call.1} parent=51 // pred_check_branch
          %639 = sbr.rel (%p637) target = $region60
        $region59: #{tpu_custom_call.1} parent=51 // pred_region
          %s640 = smul.u32 16, %s22
          %p641 = scmp.lt.s32.totalorder %s640, 63
          %s642 = scalar_select %p641, %s640, 63
          %s643 = smul.addr %s642, 8
          %s644 = scalar_lea.vmem %s5, %s643
        $region60: #{tpu_custom_call.1} parent=51 // pred_fallthru
          _
        // Predicated region
        $region61: #{tpu_custom_call.1} parent=51 // pred_check
          %p645 = pneg %p186
        $region62: #{tpu_custom_call.1} parent=51 // pred_check_branch
          %647 = sbr.rel (%p645) target = $region64
        $region63: #{tpu_custom_call.1} parent=51 // pred_region
          %s648 = smul.u32 16, %s22
          %p649 = scmp.lt.s32.totalorder %s648, 63
          %s650 = scalar_select %p649, %s648, 63
          %s651 = smul.addr %s650, 8
          %s652 = scalar_lea.vmem %s6, %s651
        $region64: #{tpu_custom_call.1} parent=51 // pred_fallthru
          _
      $region52: #{tpu_custom_call.1} parent=5 // pred_fallthru
        _
    $region6: #{tpu_custom_call.1} parent=1 // loop_footer
      %s20 = sadd.s32 1, %s16
    $region7: #{tpu_custom_call.1} parent=1 // loop_footer_branch
      %15 = sbr.rel target = $region3
    $region8: #{tpu_custom_call.1} parent=1 // loop_exit
      _
    %653 = vsyncpa [#allocation3], 1
    %s654 = scalar_lea.sflag [#allocation3], 1
    %655 = vsyncpa %s654, 1

</llo_original>
